<compile_context>
chip_gen: v7x
topology: tpu7x:2x2x1
jax: 0.10.0
libtpu: 0.0.40
codegen_flags: <defaults>
</compile_context>

<pallas_src>
import numpy as np
import jax
import jax.numpy as jnp
from jax.experimental import pallas as pl
from jax.experimental.pallas import tpu as pltpu


# ----------------------------------------------------------------------------
# Host-side (numpy) deterministic parameter setup — mirrors the torch __init__.
# ----------------------------------------------------------------------------
def generate_offset_distribution_probs(max_delta: int, iterations: int) -> np.ndarray:
    """Numpy port of generate_offset_distribution(); returns normalized probs."""
    interval_length = 2 * max_delta + 1
    diagram_size = 12 * max_delta
    tab = np.zeros((diagram_size, diagram_size), dtype=np.float32)
    tab[0, max_delta] = 1.0
    for pivot, t in enumerate(range(1, diagram_size)):
        for i in range(-max_delta, max_delta + 1):
            if 0 <= pivot + i < diagram_size:
                tab[t, pivot] += tab[t - 1, pivot + i]
        for i in range(-max_delta, max_delta + 1):
            if i != 0 and 0 <= pivot + i < diagram_size:
                tab[t, pivot + i] += (interval_length - 1) * tab[t - 1, pivot + i] + tab[t - 1, pivot]
        tab[t, :] /= interval_length
    # torch.diag(tab, -max_delta-1) == np.diagonal(tab, -(max_delta+1))
    density = np.diagonal(tab, -max_delta - 1).astype(np.float32).copy()
    idx = int(np.argmin(np.clip(density, 0.0001, None)))
    density = density[:idx]
    pad_left = len(density) - 2 * max_delta - 1
    padded = np.concatenate([np.zeros(pad_left, np.float32), density])
    sym = 0.5 * padded + 0.5 * padded[::-1]
    p_len = sym.shape[0]
    # F.conv1d(x, flip(w), padding=P//2)  ==  central P entries of full conv(x, w)
    it = sym.copy()
    for _ in range(iterations - 1):
        full = np.convolve(it, sym)
        it = full[p_len // 2: p_len // 2 + p_len]
    probs = it / it.sum()
    return probs.astype(np.float32)


def gaussian_kernel1d(kernel_size: int, sigma: float) -> np.ndarray:
    """kornia-style normalized 1D gaussian kernel."""
    x = np.arange(kernel_size, dtype=np.float32) - kernel_size // 2
    if kernel_size % 2 == 0:
        x = x + 0.5
    g = np.exp(-(x ** 2) / (2.0 * float(sigma) ** 2))
    return (g / g.sum()).astype(np.float32)


def _reflect_index(t: np.ndarray, n: int) -> np.ndarray:
    """np.pad(mode='reflect') / torch 'reflect' index mapping (no edge repeat)."""
    if n == 1:
        return np.zeros_like(t)
    period = 2 * (n - 1)
    t = np.mod(t, period)
    return np.where(t < n, t, period - t)


def blur_matrix_1d(n: int, kernel1d: np.ndarray) -> np.ndarray:
    """(n, n) matrix A with blur(x)[dst] = sum_src A[src, dst] * x[src],
    for a 1-D gaussian blur with reflect padding."""
    ks = int(kernel1d.shape[0])
    pad = ks // 2
    out_idx = np.arange(n)
    mat = np.zeros((n, n), dtype=np.float32)
    for i in range(ks):
        src = _reflect_index(out_idx + i - pad, n)
        np.add.at(mat, (src, out_idx), np.float32(kernel1d[i]))
    return mat


# ----------------------------------------------------------------------------
# Pallas kernels: separable gaussian blur of one (H, W) plane per grid step.
#   horizontal pass:  x (H, W) @ Bw (W, W)
#   vertical pass  :  AhT (H, H) @ (H, W)
# Weights are bf16, accumulation is f32, clamp fused into the second blur stage.
# ----------------------------------------------------------------------------
def _sep_blur_kernel(x_ref, ah_t_ref, bw_ref, o_ref):
    x = x_ref[...].astype(jnp.bfloat16)                                     # (H, W)
    t = jnp.dot(x, bw_ref[...], preferred_element_type=jnp.float32)        # horizontal
    y = jnp.dot(ah_t_ref[...], t.astype(jnp.bfloat16),
                preferred_element_type=jnp.float32)                        # vertical
    o_ref[...] = y.astype(o_ref.dtype)


def _sep_blur_clamp_kernel(x_ref, ah_t_ref, bw_ref, o_ref):
    x = x_ref[...].astype(jnp.bfloat16)
    t = jnp.dot(x, bw_ref[...], preferred_element_type=jnp.float32)
    y = jnp.dot(ah_t_ref[...], t.astype(jnp.bfloat16),
                preferred_element_type=jnp.float32)
    o_ref[...] = jnp.clip(y, 0.0, 1.0).astype(o_ref.dtype)


def _vmem_limit_bytes(h: int, w: int) -> int:
    # Per-step working set: double-buffered f32 in/out plane tiles + the small
    # bf16 blur matrices.  Derive the limit from the chip instead of hard-capping
    # at 64 MiB (review item); leave headroom below physical VMEM.
    need = 4 * (2 * 2 * h * w) + 2 * (h * h + w * w) + (4 << 20)
    try:
        cap = int(pltpu.get_tpu_info().vmem_capacity_bytes)
    except Exception:
        cap = 64 << 20
    return int(min(max(2 * need, 32 << 20), cap - (8 << 20)))


def separable_blur_pallas(x_flat, ah_t_bf16, bw_bf16, clamp: bool):
    """x_flat: (M, H, W) f32, one grid step per plane; returns (M, H, W) f32."""
    m, h, w = x_flat.shape
    kernel = _sep_blur_clamp_kernel if clamp else _sep_blur_kernel
    cost = pl.CostEstimate(
        flops=int(m * (2 * h * w * w + 2 * h * h * w)),
        transcendentals=0,
        bytes_accessed=int(4 * 2 * m * h * w + 2 * (h * h + w * w)),
    )
    return pl.pallas_call(
        kernel,
        out_shape=jax.ShapeDtypeStruct((m, h, w), jnp.float32),
        grid_spec=pltpu.PrefetchScalarGridSpec(
            num_scalar_prefetch=0,
            grid=(m,),
            in_specs=[
                pl.BlockSpec((None, h, w), lambda i: (i, 0, 0)),   # one image plane
                pl.BlockSpec((h, h), lambda i: (0, 0)),            # A_H^T (bf16), resident
                pl.BlockSpec((w, w), lambda i: (0, 0)),            # B_W  (bf16), resident
            ],
            out_specs=pl.BlockSpec((None, h, w), lambda i: (i, 0, 0)),
        ),
        compiler_params=pltpu.CompilerParams(
            dimension_semantics=("parallel",),
            vmem_limit_bytes=_vmem_limit_bytes(h, w),
        ),
        cost_estimate=cost,
    )(x_flat, ah_t_bf16, bw_bf16)


# ----------------------------------------------------------------------------
# GlassBlur module (JAX/Pallas)
# ----------------------------------------------------------------------------
class GlassBlurPallas:
    def __init__(self, severity: int):
        if not isinstance(severity, int):
            raise TypeError("Severity must be an integer.")
        if not 0 <= severity <= 5:
            raise ValueError("Severity must be between 0 and 5.")
        self.severity = severity
        if severity == 0:
            return
        sigma = [0.7, 0.9, 1, 1.1, 1.5][severity - 1]
        self.sigma = float(sigma)
        self.kernel_size = int(sigma * 6 // 2 * 2 + 1)
        self.kernel1d = gaussian_kernel1d(self.kernel_size, self.sigma)
        iterations = [1, 2, 3, 2, 3][severity - 1]
        self.max_delta = [1, 1, 1, 2, 3][severity - 1]
        self.probs = generate_offset_distribution_probs(self.max_delta, iterations)
        self._logits = jnp.log(jnp.asarray(self.probs))
        self._mats = {}

    def _blur_matrices(self, h: int, w: int):
        key = (h, w)
        if key not in self._mats:
            a = blur_matrix_1d(h, self.kernel1d)        # (H, H): A[src, dst]
            b = blur_matrix_1d(w, self.kernel1d)        # (W, W): B[src, dst]
            ah_t = jnp.asarray(a.T, dtype=jnp.bfloat16)  # left-multiply form
            bw = jnp.asarray(b, dtype=jnp.bfloat16)      # right-multiply form
            self._mats[key] = (ah_t, bw)
        return self._mats[key]

    def _build_src(self, offsets, h: int, w: int):
        """Reduce the torch two-assignment pixel swap to a single gather
        permutation src (out[q] = img0[src[q]]) with last-write-wins duplicates."""
        max_d = self.max_delta
        valid_h, valid_w = h - max_d, w - max_d
        n = h * w
        hs = jnp.broadcast_to(jnp.arange(max_d, h, dtype=jnp.int32)[:, None], (valid_h, valid_w))
        ws = jnp.broadcast_to(jnp.arange(max_d, w, dtype=jnp.int32)[None, :], (valid_h, valid_w))
        dy = offsets[..., 0]
        dx = offsets[..., 1]
        hs_p = jnp.clip(hs + dy, 0, h - 1)
        ws_p = jnp.clip(ws + dx, 0, w - 1)
        lin = (hs * w + ws).reshape(-1)       # unique destinations of assignment 1
        linp = (hs_p * w + ws_p).reshape(-1)
        # torch: tmp = img[lin]; img[lin] = img[linp]; img[linp] = tmp
        src = jnp.arange(n, dtype=jnp.int32).at[lin].set(linp)
        order = jnp.arange(lin.shape[0], dtype=jnp.int32)
        last = jnp.full((n,), -1, dtype=jnp.int32).at[linp].max(order)
        src = jnp.where(last >= 0, lin[jnp.clip(last, 0)], src)
        return src

    def __call__(self, img, key):
        # img: (C, H, W) float32 (like the torch module) or (B, C, H, W) batched.
        if self.severity == 0:
            return img
        img = img.astype(jnp.float32)
        batched = img.ndim == 4
        x4 = img if batched else img[None]
        b, c, h, w = x4.shape
        if self.kernel_size // 2 >= min(h, w):
            raise ValueError("Image too small for reflect padding at this severity.")
        n = h * w
        ah_t, bw = self._blur_matrices(h, w)

        # --- first gaussian blur (Pallas, separable, bf16 weights) ---
        mid = separable_blur_pallas(x4.reshape(b * c, h, w), ah_t, bw, clamp=False)
        mid = mid.reshape(b, c, n)

        # --- sample offsets from the symmetrized Categorical ---
        # TODO(synk): torch.distributions.Categorical sampling has no in-kernel
        # Pallas equivalent; sampled with jax.random.categorical in the wrapper.
        max_d = self.max_delta
        valid_h, valid_w = h - max_d, w - max_d
        p_len = int(self.probs.shape[0])
        samples = jax.random.categorical(key, self._logits, shape=(b, valid_h, valid_w, 2))
        offsets = samples.astype(jnp.int32) - (p_len // 2)

        # --- glass pixel swap as a gather permutation over flat pixel index ---
        # TODO(synk): the data-dependent duplicate-resolving pixel swap is a
        # scatter/gather with no clean Pallas TPU lowering (no dynamic lane
        # gather); applied as an XLA take_along_axis between the two blur kernels.
        src = jax.vmap(lambda o: self._build_src(o, h, w))(offsets)          # (B, N)
        idx = jnp.broadcast_to(src[:, None, :], (b, c, n))
        swapped = jnp.take_along_axis(mid, idx, axis=2).reshape(b * c, h, w)

        # --- second gaussian blur + clamp(0, 1) (Pallas, fused clamp) ---
        out = separable_blur_pallas(swapped, ah_t, bw, clamp=True)
        out = out.reshape(b, c, h, w)
        return out if batched else out[0]


if __name__ == "__main__":
    key = jax.random.PRNGKey(0)
    k_img, k_off, k_off2, k_other = jax.random.split(key, 4)

    # small batched image stack in [0, 1] (B, C, H, W)
    x = jax.random.uniform(k_img, (2, 3, 16, 16), dtype=jnp.float32)

    glass_blur = GlassBlurPallas(severity=3)
    out = jax.block_until_ready(glass_blur(x, k_off))
    assert out.shape == x.shape, (out.shape, x.shape)
    assert bool(jnp.all(out >= 0.0)) and bool(jnp.all(out <= 1.0))
    assert bool(jnp.all(jnp.isfinite(out)))

    # unbatched CHW path (matches the original torch module signature)
    x1 = x[0]
    out1 = jax.block_until_ready(glass_blur(x1, k_off2))
    assert out1.shape == x1.shape
    assert bool(jnp.all(jnp.isfinite(out1)))

    # severity 0 is a passthrough
    out0 = GlassBlurPallas(severity=0)(x1, k_other)
    assert out0.shape == x1.shape

    print("KERNEL_OK")
</pallas_src>

<mosaic_0001>
module attributes {stable_mosaic.version = 11 : i64} {
  func.func @_sep_blur_kernel(%arg0: i32, %arg1: memref<1x16x16xf32, #tpu.memory_space<vmem>>, %arg2: memref<16x16xbf16, #tpu.memory_space<vmem>>, %arg3: memref<16x16xbf16, #tpu.memory_space<vmem>>, %arg4: memref<1x16x16xf32, #tpu.memory_space<vmem>>) attributes {dimension_semantics = [#tpu.dimension_semantics<parallel>], iteration_bounds = array<i64: 6>, scalar_prefetch = 0 : i64, scratch_operands = 0 : i64, tpu.core_type = #tpu.core_type<tc>, window_params = [{transform_indices = @transform_0, window_bounds = array<i64: 1, 16, 16>}, {pipeline_mode = #tpu.pipeline_mode<synchronous>, transform_indices = @transform_1, window_bounds = array<i64: 16, 16>}, {pipeline_mode = #tpu.pipeline_mode<synchronous>, transform_indices = @transform_2, window_bounds = array<i64: 16, 16>}, {transform_indices = @transform_3, window_bounds = array<i64: 1, 16, 16>}]} {
    %c0 = arith.constant 0 : index
    %c0_0 = arith.constant 0 : index
    %c0_1 = arith.constant 0 : index
    %0 = vector.load %arg1[%c0, %c0_0, %c0_1] : memref<1x16x16xf32, #tpu.memory_space<vmem>>, vector<1x16x16xf32>
    %1 = vector.shape_cast %0 : vector<1x16x16xf32> to vector<16x16xf32>
    %2 = arith.truncf %1 : vector<16x16xf32> to vector<16x16xbf16>
    %c0_2 = arith.constant 0 : index
    %c0_3 = arith.constant 0 : index
    %3 = vector.load %arg3[%c0_2, %c0_3] : memref<16x16xbf16, #tpu.memory_space<vmem>>, vector<16x16xbf16>
    %cst = arith.constant dense<0.000000e+00> : vector<16x16xf32>
    %4 = tpu.matmul %2, %3, %cst {dimension_numbers = #tpu.dot_dimension_numbers<[1], [0], [0], [1], [0, 0, 1, 1], [], []>} : vector<16x16xbf16>, vector<16x16xbf16>, vector<16x16xf32> -> vector<16x16xf32>
    %c0_4 = arith.constant 0 : index
    %c0_5 = arith.constant 0 : index
    %5 = vector.load %arg2[%c0_4, %c0_5] : memref<16x16xbf16, #tpu.memory_space<vmem>>, vector<16x16xbf16>
    %6 = arith.truncf %4 : vector<16x16xf32> to vector<16x16xbf16>
    %cst_6 = arith.constant dense<0.000000e+00> : vector<16x16xf32>
    %7 = tpu.matmul %5, %6, %cst_6 {dimension_numbers = #tpu.dot_dimension_numbers<[1], [0], [0], [1], [0, 0, 1, 1], [], []>} : vector<16x16xbf16>, vector<16x16xbf16>, vector<16x16xf32> -> vector<16x16xf32>
    %c0_7 = arith.constant 0 : index
    %c0_8 = arith.constant 0 : index
    %c0_9 = arith.constant 0 : index
    %8 = vector.load %arg4[%c0_7, %c0_8, %c0_9] : memref<1x16x16xf32, #tpu.memory_space<vmem>>, vector<1x16x16xf32>
    %9 = vector.shape_cast %8 : vector<1x16x16xf32> to vector<16x16xf32>
    %10 = vector.shape_cast %7 : vector<16x16xf32> to vector<1x16x16xf32>
    tpu.vector_store %arg4[%c0_7, %c0_8, %c0_9], %10 {strides = array<i32>} : memref<1x16x16xf32, #tpu.memory_space<vmem>>, vector<1x16x16xf32>,
    return
  }
  func.func @transform_0(%arg0: i32) -> (i32, i32, i32) {
    %c0_i32 = arith.constant 0 : i32
    %c0_i32_0 = arith.constant 0 : i32
    %c0_i32_1 = arith.constant 0 : i32
    return %arg0, %c0_i32, %c0_i32_0 : i32, i32, i32
  }
  func.func @transform_1(%arg0: i32) -> (i32, i32) {
    %c0_i32 = arith.constant 0 : i32
    %c0_i32_0 = arith.constant 0 : i32
    %c0_i32_1 = arith.constant 0 : i32
    return %c0_i32, %c0_i32_0 : i32, i32
  }
  func.func @transform_2(%arg0: i32) -> (i32, i32) {
    %c0_i32 = arith.constant 0 : i32
    %c0_i32_0 = arith.constant 0 : i32
    %c0_i32_1 = arith.constant 0 : i32
    return %c0_i32, %c0_i32_0 : i32, i32
  }
  func.func @transform_3(%arg0: i32) -> (i32, i32, i32) {
    %c0_i32 = arith.constant 0 : i32
    %c0_i32_0 = arith.constant 0 : i32
    %c0_i32_1 = arith.constant 0 : i32
    return %arg0, %c0_i32, %c0_i32_0 : i32, i32, i32
  }
}

</mosaic_0001>

<llo_original>
// kernel: tpu_custom_call.1
$region0: #{tpu_custom_call.1}
  #allocation0 [shape = 'u32[]', space=smem, size = 0x4, offset = 0x4, fixed_abs, tag = 'smem constant byte address 0x4 - core index']
  #allocation1 [shape = 'u32[144,128]{1,0:T(1,128)}', space=vmem, size = 0x12000, scoped, tag = 'internal scratch']
  %s0 = inlined_call_operand.hbm [shape: f32[6,16,16], index: 0, kind: input, shape index: {}]
  %s1 = inlined_call_operand.hbm [shape: bf16[16,16], index: 1, kind: input, shape index: {}]
  %s2 = inlined_call_operand.hbm [shape: bf16[16,16], index: 2, kind: input, shape index: {}]
  %s3 = inlined_call_operand.hbm [shape: f32[6,16,16], index: 3, kind: output, shape index: {}]
  %s4 = sld [smem:[#allocation0]]
  $region57: #{tpu_custom_call.1} parent=0
    _
  %s6 = ssub.s32 1, %s4
  %s7 = scalar_select 0, %s6, %s4
  $region1: #{tpu_custom_call.1} parent=0
    #allocation2 [shape = 'u8[16384]{0}', space=vmem, size = 0x4000, scoped, tag = 'input window, operand 0']
    #allocation3 [shape = 's32[2]{0}', space=sflag, size = 0x8, scoped, tag = 'scoped memory for tpu_custom_call.1']
    #allocation4 [shape = 's32[2]{0}', space=sflag, size = 0x8, scoped, tag = 'scoped memory for tpu_custom_call.1']
    #allocation5 [shape = 'u8[4096]{0}', space=vmem, size = 0x1000, scoped, tag = 'input window, operand 1, single buffered']
    #allocation6 [shape = 's32[1]{0}', space=sflag, size = 0x4, scoped, tag = 'scoped memory for tpu_custom_call.1']
    #allocation7 [shape = 'u8[4096]{0}', space=vmem, size = 0x1000, scoped, tag = 'input window, operand 2, single buffered']
    #allocation8 [shape = 'u8[16384]{0}', space=vmem, size = 0x4000, scoped, tag = 'output window, operand 0']
    %8 = vsyncpa [#allocation3], 0
    %s9 = scalar_lea.sflag [#allocation3], 1
    %10 = vsyncpa %s9, 0
    %11 = vsyncpa [#allocation6], 0
    %12 = vsyncpa [#allocation4], 0
    %s13 = scalar_lea.sflag [#allocation4], 1
    %14 = vsyncpa %s13, 0
    loop: start=0, step=1, limit=8
    $region2: #{tpu_custom_call.1} parent=1 // loop_pre_header
      _
    $region3: #{tpu_custom_call.1} parent=1 // loop_header
      %s16 = sphi 0, %s20
      %p17 = scmp.ge.s32.totalorder %s16, 8
      %s26 = sphi 0, %s28
      %s29 = sphi 0, %s26
      %s30 = sphi 0, %s29
      %s46 = sphi 0, %s30
      %s50 = sphi 0, %s50
      %s52 = sphi 0, %s50
      %s53 = sphi 0, %s52
      %s67 = sphi 0, %s53
      %s71 = sphi 0, %s71
      %s73 = sphi 0, %s71
      %s74 = sphi 0, %s73
      %s88 = sphi 0, %s74
      %s94 = sphi 0, %s96
      %s97 = sphi 0, %s94
      %s98 = sphi 0, %s97
      %s114 = sphi 0, %s98
    $region4: #{tpu_custom_call.1} parent=1 // loop_header_branch
      %19 = sbr.rel (%p17) target = $region8
    $region5: #{tpu_custom_call.1} parent=1 // loop_body
      %s21 = ssub.s32 %s16, 1
      %s22 = ssub.s32 %s16, 2
      %s23 = sadd.s32 %s16, 1
      %s24 = ssub.s32 %s16, %s23
      %p25 = scmp.eq.s32.totalorder %s24, 0
      %s27 = sadd.s32 %s26, 1
      %s28 = scalar_select %p25, %s26, %s27
      %p31 = pneg %p25
      %p32 = scmp.eq.s32.totalorder %s16, 5
      %p33 = por %p31, %p32
      %p34 = scmp.ne.s32.totalorder %s26, %s29
      %p35 = scmp.eq.s32.totalorder %s16, 0
      %p36 = por %p34, %p35
      %p37 = scmp.ne.s32.totalorder %s26, %s29
      %p38 = scmp.eq.s32.totalorder %s21, 5
      %p39 = por %p37, %p38
      %p40 = scmp.ne.s32.totalorder %s29, %s30
      %p41 = scmp.eq.s32.totalorder %s21, 0
      %p42 = por %p40, %p41
      %p43 = scmp.ne.s32.totalorder %s29, %s30
      %p44 = scmp.eq.s32.totalorder %s22, 5
      %p45 = por %p43, %p44
      %p47 = scmp.ne.s32.totalorder %s30, %s46
      %p48 = scmp.eq.s32.totalorder %s22, 0
      %p49 = por %p47, %p48
      %s51 = sadd.s32 %s50, 1
      %p54 = scmp.eq.s32.totalorder %s16, 5
      %p55 = scmp.ne.s32.totalorder %s50, %s52
      %p56 = scmp.eq.s32.totalorder %s16, 0
      %p57 = por %p55, %p56
      %p58 = scmp.ne.s32.totalorder %s50, %s52
      %p59 = scmp.eq.s32.totalorder %s21, 5
      %p60 = por %p58, %p59
      %p61 = scmp.ne.s32.totalorder %s52, %s53
      %p62 = scmp.eq.s32.totalorder %s21, 0
      %p63 = por %p61, %p62
      %p64 = scmp.ne.s32.totalorder %s52, %s53
      %p65 = scmp.eq.s32.totalorder %s22, 5
      %p66 = por %p64, %p65
      %p68 = scmp.ne.s32.totalorder %s53, %s67
      %p69 = scmp.eq.s32.totalorder %s22, 0
      %p70 = por %p68, %p69
      %s72 = sadd.s32 %s71, 1
      %p75 = scmp.eq.s32.totalorder %s16, 5
      %p76 = scmp.ne.s32.totalorder %s71, %s73
      %p77 = scmp.eq.s32.totalorder %s16, 0
      %p78 = por %p76, %p77
      %p79 = scmp.ne.s32.totalorder %s71, %s73
      %p80 = scmp.eq.s32.totalorder %s21, 5
      %p81 = por %p79, %p80
      %p82 = scmp.ne.s32.totalorder %s73, %s74
      %p83 = scmp.eq.s32.totalorder %s21, 0
      %p84 = por %p82, %p83
      %p85 = scmp.ne.s32.totalorder %s73, %s74
      %p86 = scmp.eq.s32.totalorder %s22, 5
      %p87 = por %p85, %p86
      %p89 = scmp.ne.s32.totalorder %s74, %s88
      %p90 = scmp.eq.s32.totalorder %s22, 0
      %p91 = por %p89, %p90
      %s92 = ssub.s32 %s16, %s23
      %p93 = scmp.eq.s32.totalorder %s92, 0
      %s95 = sadd.s32 %s94, 1
      %s96 = scalar_select %p93, %s94, %s95
      %p99 = pneg %p93
      %p100 = scmp.eq.s32.totalorder %s16, 5
      %p101 = por %p99, %p100
      %p102 = scmp.ne.s32.totalorder %s94, %s97
      %p103 = scmp.eq.s32.totalorder %s16, 0
      %p104 = por %p102, %p103
      %p105 = scmp.ne.s32.totalorder %s94, %s97
      %p106 = scmp.eq.s32.totalorder %s21, 5
      %p107 = por %p105, %p106
      %p108 = scmp.ne.s32.totalorder %s97, %s98
      %p109 = scmp.eq.s32.totalorder %s21, 0
      %p110 = por %p108, %p109
      %p111 = scmp.ne.s32.totalorder %s97, %s98
      %p112 = scmp.eq.s32.totalorder %s22, 5
      %p113 = por %p111, %p112
      %p115 = scmp.ne.s32.totalorder %s98, %s114
      %p116 = scmp.eq.s32.totalorder %s22, 0
      %p117 = por %p115, %p116
      %p118 = scmp.le.s32.totalorder 1, %s16
      %p119 = scmp.lt.s32.totalorder %s16, 7
      %p120 = pnand %p118, %p119
      %p121 = pneg %p120
      // Predicated region
      $region9: #{tpu_custom_call.1} parent=5 // pred_check
        _
      $region10: #{tpu_custom_call.1} parent=5 // pred_check_branch
        %123 = sbr.rel (%p120) target = $region12
      $region11: #{tpu_custom_call.1} parent=5 // pred_region
        %s124 = ssub.s32 %s16, 1
        // Predicated region
        $region13: #{tpu_custom_call.1} parent=11 // pred_check
          %p125 = pneg %p63
        $region14: #{tpu_custom_call.1} parent=11 // pred_check_branch
          %127 = sbr.rel (%p125) target = $region16
        $region15: #{tpu_custom_call.1} parent=11 // pred_region
          %s129 = ssub.s32 128, 128
          %130 = vsyncadd [#allocation6], %s129
          %s131 = sshll.u32 [#allocation5], 4
          %s132 = int_to_ptr.vmem [resolvable:$true] %s131
          %137 = dma.hbm_to_vmem [thread:$0]  %s1, 128, %s132, [#allocation6], 64, 64, 4
        $region16: #{tpu_custom_call.1} parent=11 // pred_fallthru
          _
        // Predicated region
        $region17: #{tpu_custom_call.1} parent=11 // pred_check
          %p138 = pneg %p84
        $region18: #{tpu_custom_call.1} parent=11 // pred_check_branch
          %140 = sbr.rel (%p138) target = $region20
        $region19: #{tpu_custom_call.1} parent=11 // pred_region
          %s142 = ssub.s32 128, 128
          %143 = vsyncadd [#allocation6], %s142
          %s144 = sshll.u32 [#allocation7], 4
          %s145 = int_to_ptr.vmem [resolvable:$true] %s144
          %150 = dma.hbm_to_vmem [thread:$0]  %s2, 128, %s145, [#allocation6], 64, 64, 4
        $region20: #{tpu_custom_call.1} parent=11 // pred_fallthru
          _
      $region12: #{tpu_custom_call.1} parent=5 // pred_fallthru
        _
      %p151 = scmp.lt.s32.totalorder %s16, 6
      // Predicated region
      $region21: #{tpu_custom_call.1} parent=5 // pred_check
        %p152 = pneg %p151
      $region22: #{tpu_custom_call.1} parent=5 // pred_check_branch
        %154 = sbr.rel (%p152) target = $region24
      $region23: #{tpu_custom_call.1} parent=5 // pred_region
        // Predicated region
        $region25: #{tpu_custom_call.1} parent=23 // pred_check
          %p155 = pneg %p36
        $region26: #{tpu_custom_call.1} parent=23 // pred_check_branch
          %157 = sbr.rel (%p155) target = $region28
        $region27: #{tpu_custom_call.1} parent=23 // pred_region
          %s158 = sand.u32 %s26, 1
          %s159 = scalar_lea.sflag [#allocation3], %s158
          %s160 = sand.u32 %s26, 1
          %s161 = smul.addr %s160, 16
          %s162 = scalar_lea.vmem [#allocation2], %s161
          %s164 = ssub.s32 256, 256
          %165 = vsyncadd %s159, %s164
          %s166 = smul.addr %s16, 2
          %s167 = smul.addr %s166, 128
          %s168 = scalar_lea.hbm %s0, %s167
          %s169 = sshll.u32 %s162, 4
          %s170 = int_to_ptr.vmem [resolvable:$true] %s169
          %175 = dma.hbm_to_vmem [thread:$0]  %s168, 256, %s170, %s159, 128, 128, 8
        $region28: #{tpu_custom_call.1} parent=23 // pred_fallthru
          _
      $region24: #{tpu_custom_call.1} parent=5 // pred_fallthru
        _
      %p176 = scmp.le.s32.totalorder 1, %s16
      %p177 = scmp.lt.s32.totalorder %s16, 7
      %p178 = pnand %p176, %p177
      %p179 = pneg %p178
      // Predicated region
      $region29: #{tpu_custom_call.1} parent=5 // pred_check
        _
      $region30: #{tpu_custom_call.1} parent=5 // pred_check_branch
        %181 = sbr.rel (%p178) target = $region32
      $region31: #{tpu_custom_call.1} parent=5 // pred_region
        %s182 = ssub.s32 %s16, 1
        %s183 = sand.u32 %s29, 1
        %s184 = scalar_lea.sflag [#allocation3], %s183
        %s185 = sand.u32 %s29, 1
        %s186 = smul.addr %s185, 16
        %s187 = scalar_lea.vmem [#allocation2], %s186
        // Predicated region
        $region33: #{tpu_custom_call.1} parent=31 // pred_check
          %p188 = pneg %p42
        $region34: #{tpu_custom_call.1} parent=31 // pred_check_branch
          %190 = sbr.rel (%p188) target = $region36
        $region35: #{tpu_custom_call.1} parent=31 // pred_region
          %191 = dma.done %s184, 256
        $region36: #{tpu_custom_call.1} parent=31 // pred_fallthru
          _
        // Predicated region
        $region37: #{tpu_custom_call.1} parent=31 // pred_check
          %p192 = pneg %p63
        $region38: #{tpu_custom_call.1} parent=31 // pred_check_branch
          %194 = sbr.rel (%p192) target = $region40
        $region39: #{tpu_custom_call.1} parent=31 // pred_region
          %195 = dma.done [#allocation6], 128
        $region40: #{tpu_custom_call.1} parent=31 // pred_fallthru
          _
        // Predicated region
        $region41: #{tpu_custom_call.1} parent=31 // pred_check
          %p196 = pneg %p84
        $region42: #{tpu_custom_call.1} parent=31 // pred_check_branch
          %198 = sbr.rel (%p196) target = $region44
        $region43: #{tpu_custom_call.1} parent=31 // pred_region
          %199 = dma.done [#allocation6], 128
        $region44: #{tpu_custom_call.1} parent=31 // pred_fallthru
          _
        %s200 = sand.u32 %s29, 1
        %s201 = scalar_lea.sflag [#allocation3], %s200
        %s202 = sand.u32 %s29, 1
        %s203 = smul.addr %s202, 16
        %s204 = scalar_lea.vmem [#allocation2], %s203
        %p205 = pneg %p42
        %p206 = pneg %p39
        %p207 = pneg %p63
        %p208 = pneg %p60
        %p209 = pneg %p84
        %p210 = pneg %p81
        %p211 = pneg %p110
        %p212 = pneg %p107
        %s213 = sand.u32 %s97, 1
        %s214 = scalar_lea.sflag [#allocation4], %s213
        %s215 = sand.u32 %s97, 1
        %s216 = smul.addr %s215, 16
        %s217 = scalar_lea.vmem [#allocation8], %s216
        %v219 = vld [vmem:[%s187] sm:$0xff]
        %v220 = vld [vmem:[%s187 + $0x8] sm:$0xff]
        %v221 = vpack.c.bf16 %v220, %v219
        %v222 = vld [vmem:[#allocation7] sm:$0xf]
        %v223 = vld [vmem:[#allocation7 + $0x4] sm:$0xf]
        %v226 = vunpack.c.l.b16 %v222
        %v227 = vunpack.c.l.b16 %v223
        %v228 = vpack.c.b16 %v227, %v226
        %vm230 = vcmask 130048
        %v232 = vsel %vm230, %v221, 0
        %234 = vmatprep.subr.bf16.mxu0 0
        %235 = vmatpush1.bf16.msra.mxu0 %v228
        %236 = vmatprep.subr.bf16.mxu0 0
        %237 = vmatpush1.bf16.msra.mxu0 0
        %238 = vmatprep.subr.bf16.mxu0 0
        %239 = vmatpush1.bf16.msra.mxu0 0
        %240 = vmatprep.subr.bf16.mxu0 0
        %241 = vmatpush1.bf16.msra.mxu0 0
        %242 = vmatprep.subr.bf16.mxu0 0
        %243 = vmatpush1.bf16.msra.mxu0 0
        %244 = vmatprep.subr.bf16.mxu0 0
        %245 = vmatpush1.bf16.msra.mxu0 0
        %246 = vmatprep.subr.bf16.mxu0 0
        %247 = vmatpush1.bf16.msra.mxu0 0
        %248 = vmatprep.subr.bf16.mxu0 0
        %249 = vmatpush1.bf16.msra.mxu0 0
        %250 = vmatprep.subr.bf16.mxu0 0
        %251 = vmatpush1.bf16.msra.mxu0 0
        %252 = vmatprep.subr.bf16.mxu0 0
        %253 = vmatpush1.bf16.msra.mxu0 0
        %254 = vmatprep.subr.bf16.mxu0 0
        %255 = vmatpush1.bf16.msra.mxu0 0
        %256 = vmatprep.subr.bf16.mxu0 0
        %257 = vmatpush1.bf16.msra.mxu0 0
        %258 = vmatprep.subr.bf16.mxu0 0
        %259 = vmatpush1.bf16.msra.mxu0 0
        %260 = vmatprep.subr.bf16.mxu0 0
        %261 = vmatpush1.bf16.msra.mxu0 0
        %262 = vmatprep.subr.bf16.mxu0 0
        %263 = vmatpush1.bf16.msra.mxu0 0
        %264 = vmatprep.subr.bf16.mxu0 0
        %265 = vmatpush1.bf16.msra.mxu0 0
        %266 = vmatprep.mubr.bf16.mxu0 0
        %267 = vmatmul.mubr.bf16.gmra.mrb[0].mxu0 %v232
        %v268 = vpop.f32.mrb[0].mxu0
        %v269 = vadd.f32 0.0, %v268
        %v270 = vpop.f32.mrb[0].mxu0
        %v271 = vpop.f32.mrb[0].mxu0
        %v272 = vadd.f32 0.0, %v271
        %v273 = vpop.f32.mrb[0].mxu0
        %274 = vdwg.mxu0
        %v275 = vld [vmem:[#allocation5] sm:$0xf]
        %v276 = vld [vmem:[#allocation5 + $0x4] sm:$0xf]
        %v277 = vpack.c.bf16 %v272, %v269
        %v280 = vunpack.c.l.b16 %v275
        %v281 = vunpack.c.l.b16 %v276
        %v282 = vpack.c.b16 %v281, %v280
        %v284 = vsel %vm230, %v282, 0
        %286 = vmatprep.subr.bf16.mxu0 0
        %287 = vmatpush1.bf16.msra.mxu0 %v277
        %288 = vmatprep.subr.bf16.mxu0 0
        %289 = vmatpush1.bf16.msra.mxu0 0
        %290 = vmatprep.subr.bf16.mxu0 0
        %291 = vmatpush1.bf16.msra.mxu0 0
        %292 = vmatprep.subr.bf16.mxu0 0
        %293 = vmatpush1.bf16.msra.mxu0 0
        %294 = vmatprep.subr.bf16.mxu0 0
        %295 = vmatpush1.bf16.msra.mxu0 0
        %296 = vmatprep.subr.bf16.mxu0 0
        %297 = vmatpush1.bf16.msra.mxu0 0
        %298 = vmatprep.subr.bf16.mxu0 0
        %299 = vmatpush1.bf16.msra.mxu0 0
        %300 = vmatprep.subr.bf16.mxu0 0
        %301 = vmatpush1.bf16.msra.mxu0 0
        %302 = vmatprep.subr.bf16.mxu0 0
        %303 = vmatpush1.bf16.msra.mxu0 0
        %304 = vmatprep.subr.bf16.mxu0 0
        %305 = vmatpush1.bf16.msra.mxu0 0
        %306 = vmatprep.subr.bf16.mxu0 0
        %307 = vmatpush1.bf16.msra.mxu0 0
        %308 = vmatprep.subr.bf16.mxu0 0
        %309 = vmatpush1.bf16.msra.mxu0 0
        %310 = vmatprep.subr.bf16.mxu0 0
        %311 = vmatpush1.bf16.msra.mxu0 0
        %312 = vmatprep.subr.bf16.mxu0 0
        %313 = vmatpush1.bf16.msra.mxu0 0
        %314 = vmatprep.subr.bf16.mxu0 0
        %315 = vmatpush1.bf16.msra.mxu0 0
        %316 = vmatprep.subr.bf16.mxu0 0
        %317 = vmatpush1.bf16.msra.mxu0 0
        %318 = vmatprep.mubr.bf16.mxu0 0
        %319 = vmatmul.mubr.bf16.gmra.mrb[0].mxu0 %v284
        %v320 = vpop.f32.mrb[0].mxu0
        %v321 = vadd.f32 0.0, %v320
        %v322 = vpop.f32.mrb[0].mxu0
        %v323 = vpop.f32.mrb[0].mxu0
        %v324 = vadd.f32 0.0, %v323
        %v325 = vpop.f32.mrb[0].mxu0
        %326 = vdwg.mxu0
        %327 = vst.msk [vmem:[%s217] sm:$0xff] %vm230, %v321
        %328 = vst.msk [vmem:[%s217 + $0x8] sm:$0xff] %vm230, %v324
        %s329 = sand.u32 %s97, 1
        %s330 = scalar_lea.sflag [#allocation4], %s329
        %s331 = sand.u32 %s97, 1
        %s332 = smul.addr %s331, 16
        %s333 = scalar_lea.vmem [#allocation8], %s332
        // Predicated region
        $region45: #{tpu_custom_call.1} parent=31 // pred_check
          %p334 = pneg %p107
        $region46: #{tpu_custom_call.1} parent=31 // pred_check_branch
          %336 = sbr.rel (%p334) target = $region48
        $region47: #{tpu_custom_call.1} parent=31 // pred_region
          %s338 = ssub.s32 256, 256
          %339 = vsyncadd %s330, %s338
          %s340 = smul.addr %s21, 2
          %s341 = smul.addr %s340, 128
          %s342 = scalar_lea.hbm %s3, %s341
          %s343 = sshll.u32 %s333, 4
          %s344 = int_to_ptr.vmem [resolvable:$true] %s343
          %349 = dma.vmem_to_hbm [thread:$0]  %s344, 256, %s342, %s330, 128, 128, 8
        $region48: #{tpu_custom_call.1} parent=31 // pred_fallthru
          _
      $region32: #{tpu_custom_call.1} parent=5 // pred_fallthru
        _
      %p350 = scmp.le.s32.totalorder 2, %s16
      // Predicated region
      $region49: #{tpu_custom_call.1} parent=5 // pred_check
        %p351 = pneg %p350
      $region50: #{tpu_custom_call.1} parent=5 // pred_check_branch
        %353 = sbr.rel (%p351) target = $region52
      $region51: #{tpu_custom_call.1} parent=5 // pred_region
        %s354 = ssub.s32 %s16, 2
        // Predicated region
        $region53: #{tpu_custom_call.1} parent=51 // pred_check
          %p355 = pneg %p113
        $region54: #{tpu_custom_call.1} parent=51 // pred_check_branch
          %357 = sbr.rel (%p355) target = $region56
        $region55: #{tpu_custom_call.1} parent=51 // pred_region
          %s358 = sand.u32 %s98, 1
          %s359 = scalar_lea.sflag [#allocation4], %s358
          %s360 = sand.u32 %s98, 1
          %s361 = smul.addr %s360, 16
          %s362 = scalar_lea.vmem [#allocation8], %s361
          %363 = dma.done %s359, 256
        $region56: #{tpu_custom_call.1} parent=51 // pred_fallthru
          _
      $region52: #{tpu_custom_call.1} parent=5 // pred_fallthru
        _
    $region6: #{tpu_custom_call.1} parent=1 // loop_footer
      %s20 = sadd.s32 1, %s16
    $region7: #{tpu_custom_call.1} parent=1 // loop_footer_branch
      %15 = sbr.rel target = $region3
    $region8: #{tpu_custom_call.1} parent=1 // loop_exit
      _
    %364 = vsyncpa [#allocation3], 1
    %s365 = scalar_lea.sflag [#allocation3], 1
    %366 = vsyncpa %s365, 1
    %367 = vsyncpa [#allocation6], 1
    %368 = vsyncpa [#allocation4], 1
    %s369 = scalar_lea.sflag [#allocation4], 1
    %370 = vsyncpa %s369, 1

</llo_original>
